<compile_context>
chip_gen: v6e
topology: v6e:2x2x1
jax: 0.10.0
libtpu: 0.0.40
codegen_flags: <defaults>
</compile_context>

<pallas_src>
import functools

import jax
import jax.numpy as jnp
from jax.experimental import pallas as pl
from jax.experimental.pallas import tpu as pltpu


def _round_up(x, m):
    return ((x + m - 1) // m) * m


def _cdiv(a, b):
    return (a + b - 1) // b


def _pick_block(total, desired, align):
    """Largest multiple of `align` that divides `total` and is <= desired."""
    b = max(align, min(desired, total))
    b = max(align, (b // align) * align)
    while total % b != 0:
        b -= align
    return b


def _chip_config():
    """Generation-aware tiling knobs (VMEM budget, MXU alignment, defaults)."""
    kind = ""
    try:
        kind = jax.devices()[0].device_kind.lower()
    except Exception:
        pass
    vmem_cap = None
    try:
        vmem_cap = int(pltpu.get_tpu_info().vmem_capacity_bytes)
    except Exception:
        pass
    is_v7 = "v7" in kind
    if vmem_cap is None:
        vmem_cap = (64 if is_v7 else 128) * 1024 * 1024
    mxu_align = 256 if ("v6" in kind or "v7" in kind) else 128
    if is_v7:
        # 64 MiB VMEM / TC, 2 TensorCores share the chip.
        vmem_budget = 40 * 1024 * 1024
        vmem_limit = 56 * 1024 * 1024
        block_m, block_f = 256, 512
    else:
        # v5e / v6e: 128 MiB VMEM, single TensorCore -> use it.
        vmem_budget = min(96 * 1024 * 1024, int(vmem_cap * 0.75))
        vmem_limit = min(112 * 1024 * 1024, vmem_cap - 8 * 1024 * 1024)
        block_m, block_f = 512, 1024
    return dict(two_tc=is_v7, mxu_align=mxu_align, vmem_budget=vmem_budget,
                vmem_limit=vmem_limit, block_m=block_m, block_f=block_f)


def _ffn_kernel(x_ref, w1_ref, b1_ref, w2_ref, b2_ref, o_ref, acc_ref):
    f = pl.program_id(1)

    @pl.when(f == 0)
    def _():
        acc_ref[...] = jnp.zeros_like(acc_ref)

    # fc1 tile: (bm, E_p) @ (E_p, bf) -> f32 on the MXU (operands already in
    # compute dtype; no per-step VPU casts).
    h = jnp.dot(x_ref[...], w1_ref[...], preferred_element_type=jnp.float32)
    # bias + ReLU in f32 on the VPU (per F tile -- exact, ReLU is elementwise).
    h = jnp.maximum(h + b1_ref[...], 0.0)

    # fc2 partial product, accumulated in f32 across F tiles.
    acc_ref[...] += jnp.dot(h.astype(w2_ref.dtype), w2_ref[...],
                            preferred_element_type=jnp.float32)

    @pl.when(f == pl.num_programs(1) - 1)
    def _():
        o_ref[...] = (acc_ref[...] + b2_ref[...]).astype(o_ref.dtype)


@functools.partial(jax.jit, static_argnames=("bm", "bf", "vmem_limit"))
def _ffn_call(x2d, w1p, b1p, w2p, b2p, *, bm, bf, vmem_limit):
    M, E = x2d.shape
    E_p, F_p = w1p.shape
    M_p = _round_up(M, bm)

    # Only the (cheap) activation pad/cast happens per call; weights were
    # padded + cast once in prepare_params().
    x2 = jnp.pad(x2d, ((0, M_p - M), (0, E_p - E))).astype(w1p.dtype)

    grid = (M_p // bm, F_p // bf)
    act_bytes = jnp.dtype(w1p.dtype).itemsize
    out_bytes = jnp.dtype(x2d.dtype).itemsize

    cost = pl.CostEstimate(
        flops=2 * 2 * M_p * E_p * F_p,
        transcendentals=0,
        # W1/W2 are re-streamed from HBM once per M tile.
        bytes_accessed=(x2.size * act_bytes
                        + grid[0] * (w1p.size + w2p.size) * act_bytes
                        + (b1p.size + b2p.size) * 4
                        + M_p * E_p * out_bytes))

    out2 = pl.pallas_call(
        _ffn_kernel,
        out_shape=jax.ShapeDtypeStruct((M_p, E_p), x2d.dtype),
        grid_spec=pltpu.PrefetchScalarGridSpec(
            num_scalar_prefetch=0,
            grid=grid,
            in_specs=[
                pl.BlockSpec((bm, E_p), lambda i, f: (i, 0)),   # x tile (f-invariant)
                pl.BlockSpec((E_p, bf), lambda i, f: (0, f)),   # W1 tile (streams over F)
                pl.BlockSpec((1, bf),   lambda i, f: (0, f)),   # b1 tile (f32)
                pl.BlockSpec((bf, E_p), lambda i, f: (f, 0)),   # W2 tile (streams over F)
                pl.BlockSpec((1, E_p),  lambda i, f: (0, 0)),   # b2 (invariant, f32)
            ],
            out_specs=pl.BlockSpec((bm, E_p), lambda i, f: (i, 0)),
            scratch_shapes=[pltpu.VMEM((bm, E_p), jnp.float32)],
        ),
        compiler_params=pltpu.CompilerParams(
            dimension_semantics=("parallel", "arbitrary"),
            vmem_limit_bytes=vmem_limit),
        cost_estimate=cost,
    )(x2, w1p, b1p, w2p, b2p)
    # TODO(synk): on v7x, consider pipeline_mode=pl.Buffered(3) on the W1/W2
    # specs if xprof shows exposed weight DMA in the small-M/decode regime.

    return out2[:M, :E]


def prepare_params(w1, b1, w2, b2, *, compute_dtype=jnp.bfloat16):
    """One-time weight prep: pad E->mult(128), F->mult(256); cast weights to
    compute_dtype (bf16 by default; pass jnp.float32 for the exact path).
    Biases stay float32 (added in the f32 accumulator path)."""
    E, F = w1.shape
    E_p = _round_up(E, 128)
    F_p = _round_up(F, 256)
    w1p = jnp.pad(w1, ((0, E_p - E), (0, F_p - F))).astype(compute_dtype)
    w2p = jnp.pad(w2, ((0, F_p - F), (0, E_p - E))).astype(compute_dtype)
    b1p = jnp.pad(b1.reshape(1, -1), ((0, 0), (0, F_p - F))).astype(jnp.float32)
    b2p = jnp.pad(b2.reshape(1, -1), ((0, 0), (0, E_p - E))).astype(jnp.float32)
    return w1p, b1p, w2p, b2p


def feed_forward(x, params, *, block_m=None, block_f=None):
    """x: (batch, seq, emb). params = prepare_params(...). Returns (batch, seq, emb)."""
    w1p, b1p, w2p, b2p = params
    B, S, E = x.shape
    M = B * S
    E_p, F_p = w1p.shape

    cfg = _chip_config()
    block_m = cfg["block_m"] if block_m is None else block_m
    block_f = cfg["block_f"] if block_f is None else block_f
    align = cfg["mxu_align"]

    act_bytes = jnp.dtype(w1p.dtype).itemsize          # compute-dtype tiles
    out_bytes = jnp.dtype(x.dtype).itemsize
    sub = 16 if act_bytes == 2 else 8                   # bf16 packs 2 rows/sublane

    # ---- tile-size selection (static, shape + chip driven) ------------------
    bm = min(_round_up(block_m, sub), _round_up(M, sub))
    # v7x only: force >=2 M-steps so the "parallel" axis can shard across the
    # two TensorCores.  On single-TC v5e/v6e this would just double weight
    # re-streaming, so skip it there.
    if cfg["two_tc"] and _cdiv(_round_up(M, sub), bm) < 2 and bm > 128:
        bm = max(128, _round_up(_cdiv(M, 2), sub))

    bf = _pick_block(F_p, block_f, align)

    def _footprint(bm_, bf_):
        dbuf = 2
        tiles = dbuf * (bm_ * E_p * act_bytes            # x tile
                        + bm_ * E_p * out_bytes          # out tile
                        + E_p * bf_ * act_bytes          # W1 tile
                        + bf_ * E_p * act_bytes          # W2 tile
                        + (bf_ + E_p) * 4)               # f32 bias tiles
        return tiles + bm_ * E_p * 4                     # f32 accumulator

    while _footprint(bm, bf) > cfg["vmem_budget"] and bf > align:
        bf = _pick_block(F_p, bf - align, align)
    while _footprint(bm, bf) > cfg["vmem_budget"] and bm > align:
        bm = max(align, bm - align)

    out2 = _ffn_call(x.reshape(M, E), w1p, b1p, w2p, b2p,
                     bm=int(bm), bf=int(bf), vmem_limit=int(cfg["vmem_limit"]))
    return out2.reshape(B, S, E)


def init_params(key, emb_sz, ff_sz, dtype=jnp.float32):
    """Deterministic init matching nn.Linear shapes (stored transposed)."""
    k1, k2, k3, k4 = jax.random.split(key, 4)
    # torch nn.Linear default: U(-1/sqrt(fan_in), 1/sqrt(fan_in))
    lim1 = 1.0 / (emb_sz ** 0.5)
    lim2 = 1.0 / (ff_sz ** 0.5)
    w1 = jax.random.uniform(k1, (emb_sz, ff_sz), dtype, -lim1, lim1)  # fc1.weight.T
    b1 = jax.random.uniform(k2, (1, ff_sz), dtype, -lim1, lim1)       # fc1.bias
    w2 = jax.random.uniform(k3, (ff_sz, emb_sz), dtype, -lim2, lim2)  # fc2.weight.T
    b2 = jax.random.uniform(k4, (1, emb_sz), dtype, -lim2, lim2)      # fc2.bias
    return w1, b1, w2, b2


if __name__ == "__main__":
    key = jax.random.PRNGKey(0)
    kx, kp = jax.random.split(key)

    batch, seq, emb_sz, ff_sz = 2, 8, 32, 64
    x = jax.random.normal(kx, (batch, seq, emb_sz), jnp.float32)
    w1, b1, w2, b2 = init_params(kp, emb_sz, ff_sz)

    # Reference in plain JAX (same math as the torch module).
    ref = jnp.maximum(x @ w1 + b1[0], 0.0) @ w2 + b2[0]

    # Exact path: f32 MXU operands -> tight tolerance vs. the f32 reference.
    params_f32 = prepare_params(w1, b1, w2, b2, compute_dtype=jnp.float32)
    out_f32 = jax.block_until_ready(feed_forward(x, params_f32))
    assert out_f32.shape == (batch, seq, emb_sz)
    assert jnp.allclose(out_f32, ref, atol=1e-5, rtol=1e-5)

    # Default fast path: bf16 MXU operands (prepared once) with f32 accumulation.
    params_bf16 = prepare_params(w1, b1, w2, b2)
    out = jax.block_until_ready(feed_forward(x, params_bf16))
    assert out.shape == (batch, seq, emb_sz)
    assert float(jnp.max(jnp.abs(out - ref))) < 5e-2

    print("KERNEL_OK")
</pallas_src>

<mosaic_0001>
module attributes {stable_mosaic.version = 11 : i64} {
  func.func @_ffn_kernel(%arg0: i32, %arg1: i32, %arg2: memref<16x128xf32, #tpu.memory_space<vmem>>, %arg3: memref<128x256xf32, #tpu.memory_space<vmem>>, %arg4: memref<1x256xf32, #tpu.memory_space<vmem>>, %arg5: memref<256x128xf32, #tpu.memory_space<vmem>>, %arg6: memref<1x128xf32, #tpu.memory_space<vmem>>, %arg7: memref<16x128xf32, #tpu.memory_space<vmem>>, %arg8: memref<16x128xf32, #tpu.memory_space<vmem>>) attributes {dimension_semantics = [#tpu.dimension_semantics<parallel>, #tpu.dimension_semantics<arbitrary>], iteration_bounds = array<i64: 1, 1>, scalar_prefetch = 0 : i64, scratch_operands = 1 : i64, tpu.core_type = #tpu.core_type<tc>, window_params = [{transform_indices = @transform_0, window_bounds = array<i64: 16, 128>}, {transform_indices = @transform_1, window_bounds = array<i64: 128, 256>}, {transform_indices = @transform_2, window_bounds = array<i64: 1, 256>}, {transform_indices = @transform_3, window_bounds = array<i64: 256, 128>}, {pipeline_mode = #tpu.pipeline_mode<synchronous>, transform_indices = @transform_4, window_bounds = array<i64: 1, 128>}, {transform_indices = @transform_5, window_bounds = array<i64: 16, 128>}]} {
    %c0_i32 = arith.constant 0 : i32
    %0 = arith.cmpi eq, %arg1, %c0_i32 : i32
    %1 = arith.extui %0 : i1 to i32
    %c0_i32_0 = arith.constant 0 : i32
    %2 = arith.cmpi ne, %1, %c0_i32_0 : i32
    scf.if %2 {
      %cst_16 = arith.constant 0.000000e+00 : f32
      %19 = vector.broadcast %cst_16 : f32 to vector<16x128xf32>
      %c0_17 = arith.constant 0 : index
      %c0_18 = arith.constant 0 : index
      %20 = vector.load %arg8[%c0_17, %c0_18] : memref<16x128xf32, #tpu.memory_space<vmem>>, vector<16x128xf32>
      tpu.vector_store %arg8[%c0_17, %c0_18], %19 {strides = array<i32>} : memref<16x128xf32, #tpu.memory_space<vmem>>, vector<16x128xf32>,
    } else {
    }
    %c0 = arith.constant 0 : index
    %c0_1 = arith.constant 0 : index
    %3 = vector.load %arg2[%c0, %c0_1] : memref<16x128xf32, #tpu.memory_space<vmem>>, vector<16x128xf32>
    %c0_2 = arith.constant 0 : index
    %c0_3 = arith.constant 0 : index
    %4 = vector.load %arg3[%c0_2, %c0_3] : memref<128x256xf32, #tpu.memory_space<vmem>>, vector<128x256xf32>
    %cst = arith.constant dense<0.000000e+00> : vector<16x256xf32>
    %5 = tpu.matmul %3, %4, %cst {dimension_numbers = #tpu.dot_dimension_numbers<[1], [0], [0], [1], [0, 0, 1, 1], [], []>} : vector<16x128xf32>, vector<128x256xf32>, vector<16x256xf32> -> vector<16x256xf32>
    %c0_4 = arith.constant 0 : index
    %c0_5 = arith.constant 0 : index
    %6 = vector.load %arg4[%c0_4, %c0_5] : memref<1x256xf32, #tpu.memory_space<vmem>>, vector<1x256xf32>
    %7 = vector.broadcast %6 : vector<1x256xf32> to vector<16x256xf32>
    %8 = arith.addf %5, %7 : vector<16x256xf32>
    %cst_6 = arith.constant 0.000000e+00 : f32
    %9 = vector.broadcast %cst_6 : f32 to vector<16x256xf32>
    %10 = arith.maximumf %8, %9 : vector<16x256xf32>
    %c0_7 = arith.constant 0 : index
    %c0_8 = arith.constant 0 : index
    %11 = vector.load %arg8[%c0_7, %c0_8] : memref<16x128xf32, #tpu.memory_space<vmem>>, vector<16x128xf32>
    %c0_9 = arith.constant 0 : index
    %c0_10 = arith.constant 0 : index
    %12 = vector.load %arg5[%c0_9, %c0_10] : memref<256x128xf32, #tpu.memory_space<vmem>>, vector<256x128xf32>
    %cst_11 = arith.constant dense<0.000000e+00> : vector<16x128xf32>
    %13 = tpu.matmul %10, %12, %cst_11 {dimension_numbers = #tpu.dot_dimension_numbers<[1], [0], [0], [1], [0, 0, 1, 1], [], []>} : vector<16x256xf32>, vector<256x128xf32>, vector<16x128xf32> -> vector<16x128xf32>
    %14 = arith.addf %11, %13 : vector<16x128xf32>
    %c0_12 = arith.constant 0 : index
    %c0_13 = arith.constant 0 : index
    %15 = vector.load %arg8[%c0_12, %c0_13] : memref<16x128xf32, #tpu.memory_space<vmem>>, vector<16x128xf32>
    tpu.vector_store %arg8[%c0_12, %c0_13], %14 {strides = array<i32>} : memref<16x128xf32, #tpu.memory_space<vmem>>, vector<16x128xf32>,
    %c0_i32_14 = arith.constant 0 : i32
    %16 = arith.cmpi eq, %arg1, %c0_i32_14 : i32
    %17 = arith.extui %16 : i1 to i32
    %c0_i32_15 = arith.constant 0 : i32
    %18 = arith.cmpi ne, %17, %c0_i32_15 : i32
    scf.if %18 {
      %c0_16 = arith.constant 0 : index
      %c0_17 = arith.constant 0 : index
      %19 = vector.load %arg8[%c0_16, %c0_17] : memref<16x128xf32, #tpu.memory_space<vmem>>, vector<16x128xf32>
      %c0_18 = arith.constant 0 : index
      %c0_19 = arith.constant 0 : index
      %20 = vector.load %arg6[%c0_18, %c0_19] : memref<1x128xf32, #tpu.memory_space<vmem>>, vector<1x128xf32>
      %21 = vector.broadcast %20 : vector<1x128xf32> to vector<16x128xf32>
      %22 = arith.addf %19, %21 : vector<16x128xf32>
      %c0_20 = arith.constant 0 : index
      %c0_21 = arith.constant 0 : index
      %23 = vector.load %arg7[%c0_20, %c0_21] : memref<16x128xf32, #tpu.memory_space<vmem>>, vector<16x128xf32>
      tpu.vector_store %arg7[%c0_20, %c0_21], %22 {strides = array<i32>} : memref<16x128xf32, #tpu.memory_space<vmem>>, vector<16x128xf32>,
    } else {
    }
    return
  }
  func.func @transform_0(%arg0: i32, %arg1: i32) -> (i32, i32) {
    %c0_i32 = arith.constant 0 : i32
    %c0_i32_0 = arith.constant 0 : i32
    return %arg0, %c0_i32 : i32, i32
  }
  func.func @transform_1(%arg0: i32, %arg1: i32) -> (i32, i32) {
    %c0_i32 = arith.constant 0 : i32
    %c0_i32_0 = arith.constant 0 : i32
    return %c0_i32, %arg1 : i32, i32
  }
  func.func @transform_2(%arg0: i32, %arg1: i32) -> (i32, i32) {
    %c0_i32 = arith.constant 0 : i32
    %c0_i32_0 = arith.constant 0 : i32
    return %c0_i32, %arg1 : i32, i32
  }
  func.func @transform_3(%arg0: i32, %arg1: i32) -> (i32, i32) {
    %c0_i32 = arith.constant 0 : i32
    %c0_i32_0 = arith.constant 0 : i32
    return %arg1, %c0_i32 : i32, i32
  }
  func.func @transform_4(%arg0: i32, %arg1: i32) -> (i32, i32) {
    %c0_i32 = arith.constant 0 : i32
    %c0_i32_0 = arith.constant 0 : i32
    %c0_i32_1 = arith.constant 0 : i32
    return %c0_i32, %c0_i32_0 : i32, i32
  }
  func.func @transform_5(%arg0: i32, %arg1: i32) -> (i32, i32) {
    %c0_i32 = arith.constant 0 : i32
    %c0_i32_0 = arith.constant 0 : i32
    return %arg0, %c0_i32 : i32, i32
  }
}

</mosaic_0001>

<llo_original>
// kernel: _ffn_call.1
$region0: #{_ffn_call.1}
  #allocation0 [shape = 'u32[]', space=smem, size = 0x4, offset = 0x4, fixed_abs, tag = 'smem constant byte address 0x4 - core index']
  #allocation1 [shape = 'u32[144,128]{1,0:T(1,128)}', space=vmem, size = 0x12000, scoped, tag = 'internal scratch']
  #allocation2 [shape = 'f32[16,128]{1,0:T(8,128)}', space=vmem, size = 0x2000, scoped, tag = 'scratch operand']
  %s0 = inlined_call_operand.vmem [shape: f32[16,128], index: 0, kind: input, shape index: {}]
  %s1 = inlined_call_operand.hbm [shape: f32[128,256], index: 1, kind: input, shape index: {}]
  %s2 = inlined_call_operand.vmem [shape: f32[1,256], index: 2, kind: input, shape index: {}]
  %s3 = inlined_call_operand.hbm [shape: f32[256,128], index: 3, kind: input, shape index: {}]
  %s4 = inlined_call_operand.vmem [shape: f32[1,128], index: 4, kind: input, shape index: {}]
  %s5 = inlined_call_operand.hbm [shape: f32[16,128], index: 5, kind: output, shape index: {}]
  %s6 = sld [smem:[#allocation0]]
  $region46: #{_ffn_call.1} parent=0
    _
  %s8 = ssub.s32 1, %s6
  %s9 = scalar_select 0, %s8, %s6
  $region1: #{_ffn_call.1} parent=0
    #allocation3 [shape = 'u8[131072]{0}', space=vmem, size = 0x20000, scoped, tag = 'input window, operand 1, single buffered']
    #allocation4 [shape = 's32[1]{0}', space=sflag, size = 0x4, scoped, tag = 'scoped memory for _ffn_call.1']
    #allocation5 [shape = 's32[1]{0}', space=sflag, size = 0x4, scoped, tag = 'scoped memory for _ffn_call.1']
    #allocation6 [shape = 'u8[131072]{0}', space=vmem, size = 0x20000, scoped, tag = 'input window, operand 3, single buffered']
    #allocation7 [shape = 's32[1]{0}', space=sflag, size = 0x4, scoped, tag = 'scoped memory for _ffn_call.1']
    #allocation8 [shape = 'u8[8192]{0}', space=vmem, size = 0x2000, scoped, tag = 'output window, operand 0, single buffered']
    %10 = vsyncpa [#allocation4], 0
    %11 = vsyncpa [#allocation7], 0
    %12 = vsyncpa [#allocation5], 0
    // Predicated region
    $region2: #{_ffn_call.1} parent=1 // pred_check
      _
    $region3: #{_ffn_call.1} parent=1 // pred_check_branch
      %14 = sbr.rel (0) target = $region5
    $region4: #{_ffn_call.1} parent=1 // pred_region
      _
    $region5: #{_ffn_call.1} parent=1 // pred_fallthru
      _
    // Predicated region
    $region6: #{_ffn_call.1} parent=1 // pred_check
      _
    $region7: #{_ffn_call.1} parent=1 // pred_check_branch
      %16 = sbr.rel (0) target = $region9
    $region8: #{_ffn_call.1} parent=1 // pred_region
      %s18 = ssub.s32 4096, 4096
      %19 = vsyncadd [#allocation4], %s18
      %s20 = sshll.u32 [#allocation3], 4
      %s21 = int_to_ptr.vmem [resolvable:$true] %s20
      %26 = dma.hbm_to_vmem [thread:$0]  %s1, 4096, %s21, [#allocation4], 256, 256, 16
    $region9: #{_ffn_call.1} parent=1 // pred_fallthru
      _
    // Predicated region
    $region10: #{_ffn_call.1} parent=1 // pred_check
      _
    $region11: #{_ffn_call.1} parent=1 // pred_check_branch
      %28 = sbr.rel (0) target = $region13
    $region12: #{_ffn_call.1} parent=1 // pred_region
      _
    $region13: #{_ffn_call.1} parent=1 // pred_fallthru
      _
    // Predicated region
    $region14: #{_ffn_call.1} parent=1 // pred_check
      _
    $region15: #{_ffn_call.1} parent=1 // pred_check_branch
      %30 = sbr.rel (0) target = $region17
    $region16: #{_ffn_call.1} parent=1 // pred_region
      %s32 = ssub.s32 4096, 4096
      %33 = vsyncadd [#allocation7], %s32
      %s34 = sshll.u32 [#allocation6], 4
      %s35 = int_to_ptr.vmem [resolvable:$true] %s34
      %40 = dma.hbm_to_vmem [thread:$0]  %s3, 4096, %s35, [#allocation7], 128, 128, 8
    $region17: #{_ffn_call.1} parent=1 // pred_fallthru
      _
    // Predicated region
    $region18: #{_ffn_call.1} parent=1 // pred_check
      _
    $region19: #{_ffn_call.1} parent=1 // pred_check_branch
      %42 = sbr.rel (0) target = $region21
    $region20: #{_ffn_call.1} parent=1 // pred_region
      _
    $region21: #{_ffn_call.1} parent=1 // pred_fallthru
      _
    // Predicated region
    $region22: #{_ffn_call.1} parent=1 // pred_check
      _
    $region23: #{_ffn_call.1} parent=1 // pred_check_branch
      %44 = sbr.rel (0) target = $region25
    $region24: #{_ffn_call.1} parent=1 // pred_region
      %45 = dma.done [#allocation4], 4096
    $region25: #{_ffn_call.1} parent=1 // pred_fallthru
      _
    // Predicated region
    $region26: #{_ffn_call.1} parent=1 // pred_check
      _
    $region27: #{_ffn_call.1} parent=1 // pred_check_branch
      %47 = sbr.rel (0) target = $region29
    $region28: #{_ffn_call.1} parent=1 // pred_region
      %48 = dma.done [#allocation7], 4096
    $region29: #{_ffn_call.1} parent=1 // pred_fallthru
      _
    %p49 = scmp.eq.s32.totalorder 0, 0
    // Predicated region
    $region30: #{_ffn_call.1} parent=1 // pred_check
      %p50 = pneg %p49
    $region31: #{_ffn_call.1} parent=1 // pred_check_branch
      %52 = sbr.rel (%p50) target = $region33
    $region32: #{_ffn_call.1} parent=1 // pred_region
      %53 = vst [vmem:[#allocation2] sm:$0xff] 0.0
      %54 = vst [vmem:[#allocation2 + $0x8] sm:$0xff] 0.0
    $region33: #{_ffn_call.1} parent=1 // pred_fallthru
      _
    %v55 = vld [vmem:[%s0] sm:$0xff]
    %v56 = vld [vmem:[%s0 + $0x8] sm:$0xff]
    %v57 = vld [vmem:[#allocation3] sm:$0xff]
    %v58 = vld [vmem:[#allocation3 + $0x8] sm:$0xff]
    %v59 = vld [vmem:[#allocation3 + $0x10] sm:$0xff]
    %v60 = vld [vmem:[#allocation3 + $0x18] sm:$0xff]
    %v61 = vld [vmem:[#allocation3 + $0x20] sm:$0xff]
    %v62 = vld [vmem:[#allocation3 + $0x28] sm:$0xff]
    %v63 = vld [vmem:[#allocation3 + $0x30] sm:$0xff]
    %v64 = vld [vmem:[#allocation3 + $0x38] sm:$0xff]
    %v65 = vld [vmem:[#allocation3 + $0x40] sm:$0xff]
    %v66 = vld [vmem:[#allocation3 + $0x48] sm:$0xff]
    %v67 = vld [vmem:[#allocation3 + $0x50] sm:$0xff]
    %v68 = vld [vmem:[#allocation3 + $0x58] sm:$0xff]
    %v69 = vld [vmem:[#allocation3 + $0x60] sm:$0xff]
    %v70 = vld [vmem:[#allocation3 + $0x68] sm:$0xff]
    %v71 = vld [vmem:[#allocation3 + $0x70] sm:$0xff]
    %v72 = vld [vmem:[#allocation3 + $0x78] sm:$0xff]
    %v73 = vld [vmem:[#allocation3 + $0x80] sm:$0xff]
    %v74 = vld [vmem:[#allocation3 + $0x88] sm:$0xff]
    %v75 = vld [vmem:[#allocation3 + $0x90] sm:$0xff]
    %v76 = vld [vmem:[#allocation3 + $0x98] sm:$0xff]
    %v77 = vld [vmem:[#allocation3 + $0xa0] sm:$0xff]
    %v78 = vld [vmem:[#allocation3 + $0xa8] sm:$0xff]
    %v79 = vld [vmem:[#allocation3 + $0xb0] sm:$0xff]
    %v80 = vld [vmem:[#allocation3 + $0xb8] sm:$0xff]
    %v81 = vld [vmem:[#allocation3 + $0xc0] sm:$0xff]
    %v82 = vld [vmem:[#allocation3 + $0xc8] sm:$0xff]
    %v83 = vld [vmem:[#allocation3 + $0xd0] sm:$0xff]
    %v84 = vld [vmem:[#allocation3 + $0xd8] sm:$0xff]
    %v85 = vld [vmem:[#allocation3 + $0xe0] sm:$0xff]
    %v86 = vld [vmem:[#allocation3 + $0xe8] sm:$0xff]
    %v87 = vld [vmem:[#allocation3 + $0xf0] sm:$0xff]
    %v88 = vld [vmem:[#allocation3 + $0xf8] sm:$0xff]
    %v89 = vld [vmem:[%s2] sm:$0x3]
    %v91 = vlaneseq
    %v92 = vshrl.u32 %v91, 7
    %v93 = vsub.s32 0, %v92
    %v94 = vrot.slane %v89, %v93
    %v95 = vlaneseq
    %v96 = vshrl.u32 %v95, 7
    %v97 = vsub.s32 1, %v96
    %v98 = vrot.slane %v89, %v97
    %101 = vmatprep.subr.mxu0 %v88
    %102 = vmatpush1.msra.mxu0 %v87
    %103 = vmatprep.subr.mxu0 %v86
    %104 = vmatpush1.msra.mxu0 %v85
    %105 = vmatprep.subr.mxu0 %v84
    %106 = vmatpush1.msra.mxu0 %v83
    %107 = vmatprep.subr.mxu0 %v82
    %108 = vmatpush1.msra.mxu0 %v81
    %109 = vmatprep.subr.mxu0 %v80
    %110 = vmatpush1.msra.mxu0 %v79
    %111 = vmatprep.subr.mxu0 %v78
    %112 = vmatpush1.msra.mxu0 %v77
    %113 = vmatprep.subr.mxu0 %v76
    %114 = vmatpush1.msra.mxu0 %v75
    %115 = vmatprep.subr.mxu0 %v74
    %116 = vmatpush1.msra.mxu0 %v73
    %117 = vmatprep.subr.mxu0 %v72
    %118 = vmatpush1.msra.mxu0 %v71
    %119 = vmatprep.subr.mxu0 %v70
    %120 = vmatpush1.msra.mxu0 %v69
    %121 = vmatprep.subr.mxu0 %v68
    %122 = vmatpush1.msra.mxu0 %v67
    %123 = vmatprep.subr.mxu0 %v66
    %124 = vmatpush1.msra.mxu0 %v65
    %125 = vmatprep.subr.mxu0 %v64
    %126 = vmatpush1.msra.mxu0 %v63
    %127 = vmatprep.subr.mxu0 %v62
    %128 = vmatpush1.msra.mxu0 %v61
    %129 = vmatprep.subr.mxu0 %v60
    %130 = vmatpush1.msra.mxu0 %v59
    %131 = vmatprep.subr.mxu0 %v58
    %132 = vmatpush1.msra.mxu0 %v57
    %133 = vmatprep.subr.mxu0 0.0
    %134 = vmatpush2.msra.mxu0 0.0
    %135 = vmatprep.subr.mxu0 0.0
    %136 = vmatpush2.msra.mxu0 0.0
    %137 = vmatprep.subr.mxu0 0.0
    %138 = vmatpush2.msra.mxu0 0.0
    %139 = vmatprep.subr.mxu0 0.0
    %140 = vmatpush2.msra.mxu0 0.0
    %141 = vmatprep.subr.mxu0 0.0
    %142 = vmatpush2.msra.mxu0 0.0
    %143 = vmatprep.subr.mxu0 0.0
    %144 = vmatpush2.msra.mxu0 0.0
    %145 = vmatprep.subr.mxu0 0.0
    %146 = vmatpush2.msra.mxu0 0.0
    %147 = vmatprep.subr.mxu0 0.0
    %148 = vmatpush2.msra.mxu0 0.0
    %149 = vmatprep.subr.mxu0 0.0
    %150 = vmatpush2.msra.mxu0 0.0
    %151 = vmatprep.subr.mxu0 0.0
    %152 = vmatpush2.msra.mxu0 0.0
    %153 = vmatprep.subr.mxu0 0.0
    %154 = vmatpush2.msra.mxu0 0.0
    %155 = vmatprep.subr.mxu0 0.0
    %156 = vmatpush2.msra.mxu0 0.0
    %157 = vmatprep.subr.mxu0 0.0
    %158 = vmatpush2.msra.mxu0 0.0
    %159 = vmatprep.subr.mxu0 0.0
    %160 = vmatpush2.msra.mxu0 0.0
    %161 = vmatprep.subr.mxu0 0.0
    %162 = vmatpush2.msra.mxu0 0.0
    %163 = vmatprep.subr.mxu0 0.0
    %164 = vmatpush2.msra.mxu0 0.0
    %165 = vmatprep.mubr.f32.mxu0 0.0
    %166 = vmatmul.mubr.f32.gmra.mxu0 %v55
    %v167 = vpop.f32.mrf.mxu0
    %v168 = vadd.f32 %v94, %v167
    %v169 = vpop.f32.mrf.mxu0
    %v170 = vadd.f32 %v98, %v169
    %171 = vmatprep.mubr.f32.mxu0 0.0
    %172 = vmatmul.mubr.f32.gmra.mxu0 %v56
    %v173 = vpop.f32.mrf.mxu0
    %v174 = vadd.f32 %v94, %v173
    %v175 = vpop.f32.mrf.mxu0
    %v176 = vadd.f32 %v98, %v175
    %177 = vdwg.mxu0
    %v178 = vmax.f32 %v168, 0.0
    %v179 = vmax.f32 %v170, 0.0
    %v180 = vmax.f32 %v174, 0.0
    %v181 = vmax.f32 %v176, 0.0
    %v182 = vld [vmem:[#allocation2] sm:$0xff]
    %v183 = vld [vmem:[#allocation2 + $0x8] sm:$0xff]
    %v184 = vld [vmem:[#allocation6] sm:$0xff]
    %v185 = vld [vmem:[#allocation6 + $0x8] sm:$0xff]
    %v186 = vld [vmem:[#allocation6 + $0x10] sm:$0xff]
    %v187 = vld [vmem:[#allocation6 + $0x18] sm:$0xff]
    %v188 = vld [vmem:[#allocation6 + $0x20] sm:$0xff]
    %v189 = vld [vmem:[#allocation6 + $0x28] sm:$0xff]
    %v190 = vld [vmem:[#allocation6 + $0x30] sm:$0xff]
    %v191 = vld [vmem:[#allocation6 + $0x38] sm:$0xff]
    %v192 = vld [vmem:[#allocation6 + $0x40] sm:$0xff]
    %v193 = vld [vmem:[#allocation6 + $0x48] sm:$0xff]
    %v194 = vld [vmem:[#allocation6 + $0x50] sm:$0xff]
    %v195 = vld [vmem:[#allocation6 + $0x58] sm:$0xff]
    %v196 = vld [vmem:[#allocation6 + $0x60] sm:$0xff]
    %v197 = vld [vmem:[#allocation6 + $0x68] sm:$0xff]
    %v198 = vld [vmem:[#allocation6 + $0x70] sm:$0xff]
    %v199 = vld [vmem:[#allocation6 + $0x78] sm:$0xff]
    %v200 = vld [vmem:[#allocation6 + $0x80] sm:$0xff]
    %v201 = vld [vmem:[#allocation6 + $0x88] sm:$0xff]
    %v202 = vld [vmem:[#allocation6 + $0x90] sm:$0xff]
    %v203 = vld [vmem:[#allocation6 + $0x98] sm:$0xff]
    %v204 = vld [vmem:[#allocation6 + $0xa0] sm:$0xff]
    %v205 = vld [vmem:[#allocation6 + $0xa8] sm:$0xff]
    %v206 = vld [vmem:[#allocation6 + $0xb0] sm:$0xff]
    %v207 = vld [vmem:[#allocation6 + $0xb8] sm:$0xff]
    %v208 = vld [vmem:[#allocation6 + $0xc0] sm:$0xff]
    %v209 = vld [vmem:[#allocation6 + $0xc8] sm:$0xff]
    %v210 = vld [vmem:[#allocation6 + $0xd0] sm:$0xff]
    %v211 = vld [vmem:[#allocation6 + $0xd8] sm:$0xff]
    %v212 = vld [vmem:[#allocation6 + $0xe0] sm:$0xff]
    %v213 = vld [vmem:[#allocation6 + $0xe8] sm:$0xff]
    %v214 = vld [vmem:[#allocation6 + $0xf0] sm:$0xff]
    %v215 = vld [vmem:[#allocation6 + $0xf8] sm:$0xff]
    %216 = vmatprep.subr.mxu0 0.0
    %217 = vmatpush1.msra.mxu0 %v199
    %218 = vmatprep.subr.mxu0 0.0
    %219 = vmatpush1.msra.mxu0 %v198
    %220 = vmatprep.subr.mxu0 0.0
    %221 = vmatpush1.msra.mxu0 %v197
    %222 = vmatprep.subr.mxu0 0.0
    %223 = vmatpush1.msra.mxu0 %v196
    %224 = vmatprep.subr.mxu0 0.0
    %225 = vmatpush1.msra.mxu0 %v195
    %226 = vmatprep.subr.mxu0 0.0
    %227 = vmatpush1.msra.mxu0 %v194
    %228 = vmatprep.subr.mxu0 0.0
    %229 = vmatpush1.msra.mxu0 %v193
    %230 = vmatprep.subr.mxu0 0.0
    %231 = vmatpush1.msra.mxu0 %v192
    %232 = vmatprep.subr.mxu0 0.0
    %233 = vmatpush1.msra.mxu0 %v191
    %234 = vmatprep.subr.mxu0 0.0
    %235 = vmatpush1.msra.mxu0 %v190
    %236 = vmatprep.subr.mxu0 0.0
    %237 = vmatpush1.msra.mxu0 %v189
    %238 = vmatprep.subr.mxu0 0.0
    %239 = vmatpush1.msra.mxu0 %v188
    %240 = vmatprep.subr.mxu0 0.0
    %241 = vmatpush1.msra.mxu0 %v187
    %242 = vmatprep.subr.mxu0 0.0
    %243 = vmatpush1.msra.mxu0 %v186
    %244 = vmatprep.subr.mxu0 0.0
    %245 = vmatpush1.msra.mxu0 %v185
    %246 = vmatprep.subr.mxu0 0.0
    %247 = vmatpush1.msra.mxu0 %v184
    %248 = vmatprep.subr.mxu0 0.0
    %249 = vmatpush2.msra.mxu0 %v215
    %250 = vmatprep.subr.mxu0 0.0
    %251 = vmatpush2.msra.mxu0 %v214
    %252 = vmatprep.subr.mxu0 0.0
    %253 = vmatpush2.msra.mxu0 %v213
    %254 = vmatprep.subr.mxu0 0.0
    %255 = vmatpush2.msra.mxu0 %v212
    %256 = vmatprep.subr.mxu0 0.0
    %257 = vmatpush2.msra.mxu0 %v211
    %258 = vmatprep.subr.mxu0 0.0
    %259 = vmatpush2.msra.mxu0 %v210
    %260 = vmatprep.subr.mxu0 0.0
    %261 = vmatpush2.msra.mxu0 %v209
    %262 = vmatprep.subr.mxu0 0.0
    %263 = vmatpush2.msra.mxu0 %v208
    %264 = vmatprep.subr.mxu0 0.0
    %265 = vmatpush2.msra.mxu0 %v207
    %266 = vmatprep.subr.mxu0 0.0
    %267 = vmatpush2.msra.mxu0 %v206
    %268 = vmatprep.subr.mxu0 0.0
    %269 = vmatpush2.msra.mxu0 %v205
    %270 = vmatprep.subr.mxu0 0.0
    %271 = vmatpush2.msra.mxu0 %v204
    %272 = vmatprep.subr.mxu0 0.0
    %273 = vmatpush2.msra.mxu0 %v203
    %274 = vmatprep.subr.mxu0 0.0
    %275 = vmatpush2.msra.mxu0 %v202
    %276 = vmatprep.subr.mxu0 0.0
    %277 = vmatpush2.msra.mxu0 %v201
    %278 = vmatprep.subr.mxu0 0.0
    %279 = vmatpush2.msra.mxu0 %v200
    %280 = vmatprep.mubr.f32.mxu0 %v179
    %281 = vmatmul.mubr.f32.gmra.mxu0 %v178
    %v282 = vpop.f32.mrf.mxu0
    %v283 = vadd.f32 0.0, %v282
    %v284 = vpop.f32.mrf.mxu0
    %285 = vmatprep.mubr.f32.mxu0 %v181
    %286 = vmatmul.mubr.f32.gmra.mxu0 %v180
    %v287 = vpop.f32.mrf.mxu0
    %v288 = vadd.f32 0.0, %v287
    %v289 = vpop.f32.mrf.mxu0
    %290 = vdwg.mxu0
    %v291 = vadd.f32 %v182, %v283
    %v292 = vadd.f32 %v183, %v288
    %293 = vst [vmem:[#allocation2] sm:$0xff] %v291
    %294 = vst [vmem:[#allocation2 + $0x8] sm:$0xff] %v292
    // Predicated region
    $region34: #{_ffn_call.1} parent=1 // pred_check
      %p295 = pneg %p49
    $region35: #{_ffn_call.1} parent=1 // pred_check_branch
      %297 = sbr.rel (%p295) target = $region37
    $region36: #{_ffn_call.1} parent=1 // pred_region
      %v298 = vld [vmem:[#allocation2] sm:$0xff]
      %v299 = vld [vmem:[#allocation2 + $0x8] sm:$0xff]
      %v300 = vld [vmem:[%s4] sm:$0x1]
      %v302 = vlaneseq
      %v303 = vshrl.u32 %v302, 7
      %v304 = vsub.s32 0, %v303
      %v305 = vrot.slane %v300, %v304
      %v307 = vadd.f32 %v298, %v305
      %v308 = vadd.f32 %v299, %v305
      %309 = vst [vmem:[#allocation8] sm:$0xff] %v307
      %310 = vst [vmem:[#allocation8 + $0x8] sm:$0xff] %v308
    $region37: #{_ffn_call.1} parent=1 // pred_fallthru
      _
    // Predicated region
    $region38: #{_ffn_call.1} parent=1 // pred_check
      _
    $region39: #{_ffn_call.1} parent=1 // pred_check_branch
      %312 = sbr.rel (0) target = $region41
    $region40: #{_ffn_call.1} parent=1 // pred_region
      %s314 = ssub.s32 256, 256
      %315 = vsyncadd [#allocation5], %s314
      %s316 = sshll.u32 [#allocation8], 4
      %s317 = int_to_ptr.vmem [resolvable:$true] %s316
      %322 = dma.vmem_to_hbm [thread:$0]  %s317, 256, %s5, [#allocation5], 128, 128, 8
    $region41: #{_ffn_call.1} parent=1 // pred_fallthru
      _
    // Predicated region
    $region42: #{_ffn_call.1} parent=1 // pred_check
      _
    $region43: #{_ffn_call.1} parent=1 // pred_check_branch
      %324 = sbr.rel (0) target = $region45
    $region44: #{_ffn_call.1} parent=1 // pred_region
      %325 = dma.done [#allocation5], 256
    $region45: #{_ffn_call.1} parent=1 // pred_fallthru
      _
    %326 = vsyncpa [#allocation4], 1
    %327 = vsyncpa [#allocation7], 1
    %328 = vsyncpa [#allocation5], 1

</llo_original>
